<compile_context>
chip_gen: v5e
topology: v5e:2x2
jax: 0.10.0
libtpu: 0.0.40
codegen_flags: <defaults>
</compile_context>

<pallas_src>
import functools

import jax
import jax.numpy as jnp
from jax.experimental import pallas as pl
from jax.experimental.pallas import tpu as pltpu


# ----------------------------------------------------------------------------
# Kernel
# ----------------------------------------------------------------------------
def _flash_body(qw_ref, kw_ref, vw_ref, out_ref, m_ref, l_ref, acc_ref,
                *, keep, scale):
    """One (b, q_tile, kv_tile) step of head-batched flash attention.

    qw_ref : (1, H, tq, d_k) bf16      kw_ref : (1, H, tk, d_k) bf16
    vw_ref : (1, H, tk, d_v) bf16      out_ref: (1, H, tq, d_v) bf16
    m_ref/l_ref: (H, tq, 1) f32        acc_ref: (H, tq, d_v) f32
    keep   : (tq, tk) bool or None     scale  : python float 1/(2*d_k)
    """
    kv = pl.program_id(2)

    @pl.when(kv == 0)
    def _init():
        m_ref[...] = jnp.full(m_ref.shape, -jnp.inf, jnp.float32)
        l_ref[...] = jnp.zeros(l_ref.shape, jnp.float32)
        acc_ref[...] = jnp.zeros(acc_ref.shape, jnp.float32)

    q = qw_ref[0]                                  # (H, tq, d_k) bf16
    k = kw_ref[0]                                  # (H, tk, d_k) bf16
    v = vw_ref[0]                                  # (H, tk, d_v) bf16

    # Head-batched QK^T on the MXU, f32 accumulation.
    s = jnp.einsum("hqd,hkd->hqk", q, k,
                   preferred_element_type=jnp.float32)      # (H, tq, tk)
    if keep is not None:
        # Assignment semantics of the PyTorch module: masked scores := -1e32.
        # (Python float literal -> no captured constant.)
        s = jnp.where(keep[None, :, :], s, -1e32)

    m_prev = m_ref[...]                            # (H, tq, 1)
    m_new = jnp.maximum(m_prev, jnp.max(s, axis=-1, keepdims=True))
    alpha = jnp.exp(m_prev - m_new)                # f32 (EUP)
    p = jnp.exp(s - m_new)                         # f32 softmax numerator
    l_ref[...] = alpha * l_ref[...] + jnp.sum(p, axis=-1, keepdims=True)
    acc_ref[...] = alpha * acc_ref[...] + jnp.einsum(
        "hqk,hkv->hqv", p.astype(v.dtype), v,
        preferred_element_type=jnp.float32)
    m_ref[...] = m_new

    @pl.when(kv == pl.num_programs(2) - 1)
    def _finalize():
        # softmax(scores) / (2*d_k); exact divide, once per q tile.
        out_ref[0] = (acc_ref[...] * (scale / l_ref[...])).astype(out_ref.dtype)


def _kernel_nomask(qw_ref, kw_ref, vw_ref, out_ref, m_ref, l_ref, acc_ref,
                   *, scale):
    _flash_body(qw_ref, kw_ref, vw_ref, out_ref, m_ref, l_ref, acc_ref,
                keep=None, scale=scale)


def _kernel_mask2d(qm_ref, km_ref, qw_ref, kw_ref, vw_ref, out_ref,
                   m_ref, l_ref, acc_ref, *, scale):
    # qm_ref: (1, tq, 1), km_ref: (1, 1, tk) -> keep[i, j] = qm[i] & km[j]
    keep = (qm_ref[0] != 0.0) & (km_ref[0] != 0.0)          # (tq, tk)
    _flash_body(qw_ref, kw_ref, vw_ref, out_ref, m_ref, l_ref, acc_ref,
                keep=keep, scale=scale)


def _kernel_mask3d(mk_ref, qw_ref, kw_ref, vw_ref, out_ref,
                   m_ref, l_ref, acc_ref, *, scale):
    keep = mk_ref[0] != 0.0                                 # (tq, tk)
    _flash_body(qw_ref, kw_ref, vw_ref, out_ref, m_ref, l_ref, acc_ref,
                keep=keep, scale=scale)


# ----------------------------------------------------------------------------
# Wrapper
# ----------------------------------------------------------------------------
def _pick_tile(S, prefs):
    for t in prefs:
        if t <= S and S % t == 0:
            return t
    return S


def multi_head_attention(params, Q, K, V, mask=None, *, tq=None, tk=None):
    B, S, d_model = Q.shape
    H, _, d_k = params["wq"].shape
    d_v = params["wv"].shape[-1]
    f32, bf16 = jnp.float32, jnp.bfloat16

    # ---- Hoisted projections (exact f32 Linear per head), bf16 for streaming.
    QWh = (jnp.einsum("bsm,hmk->bhsk", Q, params["wq"])
           + params["bq"][None, :, None, :]).astype(bf16)   # (B, H, S, d_k)
    KWh = (jnp.einsum("bsm,hmk->bhsk", K, params["wk"])
           + params["bk"][None, :, None, :]).astype(bf16)   # (B, H, S, d_k)
    VWh = (jnp.einsum("bsm,hmv->bhsv", V, params["wv"])
           + params["bv"][None, :, None, :]).astype(bf16)   # (B, H, S, d_v)

    if tq is None:
        tq = _pick_tile(S, (256, 128))
    if tk is None:
        tk = _pick_tile(S, (512, 256, 128))
    n_q, n_kv = S // tq, S // tk
    grid = (B, n_q, n_kv)
    scale = 1.0 / (2.0 * d_k)                                # softmax / d_k / 2

    qw_spec = pl.BlockSpec((1, H, tq, d_k), lambda b, qi, ki: (b, 0, qi, 0))
    kw_spec = pl.BlockSpec((1, H, tk, d_k), lambda b, qi, ki: (b, 0, ki, 0))
    vw_spec = pl.BlockSpec((1, H, tk, d_v), lambda b, qi, ki: (b, 0, ki, 0))
    out_spec = pl.BlockSpec((1, H, tq, d_v), lambda b, qi, ki: (b, 0, qi, 0))

    in_specs, args = [], []
    mask_bytes = 0
    if mask is None:
        kernel = functools.partial(_kernel_nomask, scale=scale)
    elif mask.ndim == 2:
        # Padding mask: never materialize (B, S, S); stream row/col masks.
        qm = mask.astype(f32).reshape(B, S, 1)
        km = mask.astype(f32).reshape(B, 1, S)
        in_specs += [pl.BlockSpec((1, tq, 1), lambda b, qi, ki: (b, qi, 0)),
                     pl.BlockSpec((1, 1, tk), lambda b, qi, ki: (b, 0, ki))]
        args += [qm, km]
        mask_bytes = 2 * B * S * 4
        kernel = functools.partial(_kernel_mask2d, scale=scale)
    else:
        mk = mask.astype(f32)                                # (B, S, S)
        in_specs += [pl.BlockSpec((1, tq, tk), lambda b, qi, ki: (b, qi, ki))]
        args += [mk]
        mask_bytes = B * S * S * 4
        kernel = functools.partial(_kernel_mask3d, scale=scale)

    in_specs += [qw_spec, kw_spec, vw_spec]
    args += [QWh, KWh, VWh]

    cost = pl.CostEstimate(
        flops=2 * B * H * S * S * (d_k + d_v),
        transcendentals=B * H * S * S,
        bytes_accessed=(B * H * S * d_k * 2 * n_kv            # QW re-streamed
                        + B * H * S * (d_k + d_v) * 2 * n_q   # KW/VW re-streamed
                        + B * H * S * d_v * 2                 # output (bf16)
                        + mask_bytes),
    )

    attn = pl.pallas_call(
        kernel,
        out_shape=jax.ShapeDtypeStruct((B, H, S, d_v), bf16),
        grid_spec=pltpu.PrefetchScalarGridSpec(
            num_scalar_prefetch=0,
            grid=grid,
            in_specs=in_specs,
            out_specs=out_spec,
            scratch_shapes=[
                pltpu.VMEM((H, tq, 1), jnp.float32),          # running max m
                pltpu.VMEM((H, tq, 1), jnp.float32),          # running sum l
                pltpu.VMEM((H, tq, d_v), jnp.float32),        # f32 accumulator
            ],
        ),
        compiler_params=pltpu.CompilerParams(
            dimension_semantics=("parallel", "parallel", "arbitrary")),
        cost_estimate=cost,
    )(*args)

    # ---- Hoisted output projection (head concat + Linear) in XLA.
    out = jnp.einsum("bhsv,hvd->bsd", attn.astype(f32), params["wo"])
    return out + params["bo"]


# ----------------------------------------------------------------------------
# Pure-JAX reference (mirrors the PyTorch forward exactly)
# ----------------------------------------------------------------------------
def multi_head_attention_ref(params, Q, K, V, mask=None):
    H, d_model, d_k = params["wq"].shape
    d_v = params["wv"].shape[-1]

    if mask is not None and mask.ndim == 2:
        m = mask.astype(jnp.float32)
        mask3 = (m[:, :, None] * m[:, None, :]) != 0
    elif mask is not None:
        mask3 = mask != 0
    else:
        mask3 = None

    heads = []
    for h in range(H):
        qw = Q @ params["wq"][h] + params["bq"][h]
        kw = K @ params["wk"][h] + params["bk"][h]
        vw = V @ params["wv"][h] + params["bv"][h]
        scores = jnp.einsum("bsd,btd->bst", qw, kw)
        if mask3 is not None:
            scores = jnp.where(mask3, scores, -1e32)
        p = jax.nn.softmax(scores, axis=-1) / d_k / 2.0
        heads.append(jnp.einsum("bst,btv->bsv", p, vw))
    cat = jnp.concatenate(heads, axis=-1)                    # (B, S, H*d_v)
    wo = params["wo"].reshape(H * d_v, d_model)
    return cat @ wo + params["bo"]


if __name__ == "__main__":
    B, S = 2, 8
    d_model, d_k, d_v, H = 32, 8, 8, 4     # d_o unused in the PyTorch forward

    key = jax.random.PRNGKey(0)
    ks = jax.random.split(key, 11)
    params = dict(
        wq=0.1 * jax.random.normal(ks[0], (H, d_model, d_k), jnp.float32),
        bq=0.1 * jax.random.normal(ks[1], (H, d_k), jnp.float32),
        wk=0.1 * jax.random.normal(ks[2], (H, d_model, d_k), jnp.float32),
        bk=0.1 * jax.random.normal(ks[3], (H, d_k), jnp.float32),
        wv=0.1 * jax.random.normal(ks[4], (H, d_model, d_v), jnp.float32),
        bv=0.1 * jax.random.normal(ks[5], (H, d_v), jnp.float32),
        wo=0.1 * jax.random.normal(ks[6], (H, d_v, d_model), jnp.float32),
        bo=0.1 * jax.random.normal(ks[7], (d_model,), jnp.float32),
    )
    Q = jax.random.normal(ks[8], (B, S, d_model), jnp.float32)
    K = jax.random.normal(ks[9], (B, S, d_model), jnp.float32)
    V = jax.random.normal(ks[10], (B, S, d_model), jnp.float32)

    # --- no mask ---
    out = multi_head_attention(params, Q, K, V, mask=None)
    jax.block_until_ready(out)
    ref = multi_head_attention_ref(params, Q, K, V, mask=None)
    assert out.shape == (B, S, d_model), out.shape
    assert jnp.allclose(out, ref, atol=2e-2, rtol=2e-2), \
        float(jnp.max(jnp.abs(out - ref)))

    # --- 2-D padding mask (includes fully-masked rows in batch 0) ---
    pad_mask = jnp.array([[1, 1, 1, 1, 1, 1, 0, 0],
                          [1, 1, 1, 1, 1, 1, 1, 1]], dtype=jnp.float32)
    out_m = multi_head_attention(params, Q, K, V, mask=pad_mask)
    jax.block_until_ready(out_m)
    ref_m = multi_head_attention_ref(params, Q, K, V, mask=pad_mask)
    assert jnp.allclose(out_m, ref_m, atol=2e-2, rtol=2e-2), \
        float(jnp.max(jnp.abs(out_m - ref_m)))

    # --- 3-D (causal) mask ---
    causal = jnp.broadcast_to(jnp.tril(jnp.ones((S, S), jnp.float32)), (B, S, S))
    out_c = multi_head_attention(params, Q, K, V, mask=causal)
    jax.block_until_ready(out_c)
    ref_c = multi_head_attention_ref(params, Q, K, V, mask=causal)
    assert jnp.allclose(out_c, ref_c, atol=2e-2, rtol=2e-2), \
        float(jnp.max(jnp.abs(out_c - ref_c)))

    print("KERNEL_OK")
</pallas_src>

<mosaic_0001>
module attributes {stable_mosaic.version = 11 : i64} {
  func.func @_kernel_nomask(%arg0: i32, %arg1: i32, %arg2: i32, %arg3: memref<1x4x8x8xbf16, #tpu.memory_space<vmem>>, %arg4: memref<1x4x8x8xbf16, #tpu.memory_space<vmem>>, %arg5: memref<1x4x8x8xbf16, #tpu.memory_space<vmem>>, %arg6: memref<1x4x8x8xbf16, #tpu.memory_space<vmem>>, %arg7: memref<4x8x1xf32, #tpu.memory_space<vmem>>, %arg8: memref<4x8x1xf32, #tpu.memory_space<vmem>>, %arg9: memref<4x8x8xf32, #tpu.memory_space<vmem>>) attributes {dimension_semantics = [#tpu.dimension_semantics<parallel>, #tpu.dimension_semantics<parallel>, #tpu.dimension_semantics<arbitrary>], iteration_bounds = array<i64: 2, 1, 1>, scalar_prefetch = 0 : i64, scratch_operands = 3 : i64, tpu.core_type = #tpu.core_type<tc>, window_params = [{transform_indices = @transform_0, window_bounds = array<i64: 1, 4, 8, 8>}, {transform_indices = @transform_1, window_bounds = array<i64: 1, 4, 8, 8>}, {transform_indices = @transform_2, window_bounds = array<i64: 1, 4, 8, 8>}, {transform_indices = @transform_3, window_bounds = array<i64: 1, 4, 8, 8>}]} {
    %c0_i32 = arith.constant 0 : i32
    %0 = arith.cmpi eq, %arg2, %c0_i32 : i32
    %1 = arith.extui %0 : i1 to i32
    %c0_i32_0 = arith.constant 0 : i32
    %2 = arith.cmpi ne, %1, %c0_i32_0 : i32
    scf.if %2 {
      %cst_35 = arith.constant 0xFF800000 : f32
      %36 = vector.broadcast %cst_35 : f32 to vector<4x8x1xf32>
      %c0_36 = arith.constant 0 : index
      %c0_37 = arith.constant 0 : index
      %c0_38 = arith.constant 0 : index
      %37 = vector.load %arg7[%c0_36, %c0_37, %c0_38] : memref<4x8x1xf32, #tpu.memory_space<vmem>>, vector<4x8x1xf32>
      tpu.vector_store %arg7[%c0_36, %c0_37, %c0_38], %36 {strides = array<i32>} : memref<4x8x1xf32, #tpu.memory_space<vmem>>, vector<4x8x1xf32>,
      %cst_39 = arith.constant 0.000000e+00 : f32
      %38 = vector.broadcast %cst_39 : f32 to vector<4x8x1xf32>
      %c0_40 = arith.constant 0 : index
      %c0_41 = arith.constant 0 : index
      %c0_42 = arith.constant 0 : index
      %39 = vector.load %arg8[%c0_40, %c0_41, %c0_42] : memref<4x8x1xf32, #tpu.memory_space<vmem>>, vector<4x8x1xf32>
      tpu.vector_store %arg8[%c0_40, %c0_41, %c0_42], %38 {strides = array<i32>} : memref<4x8x1xf32, #tpu.memory_space<vmem>>, vector<4x8x1xf32>,
      %cst_43 = arith.constant 0.000000e+00 : f32
      %40 = vector.broadcast %cst_43 : f32 to vector<4x8x8xf32>
      %c0_44 = arith.constant 0 : index
      %c0_45 = arith.constant 0 : index
      %c0_46 = arith.constant 0 : index
      %41 = vector.load %arg9[%c0_44, %c0_45, %c0_46] : memref<4x8x8xf32, #tpu.memory_space<vmem>>, vector<4x8x8xf32>
      tpu.vector_store %arg9[%c0_44, %c0_45, %c0_46], %40 {strides = array<i32>} : memref<4x8x8xf32, #tpu.memory_space<vmem>>, vector<4x8x8xf32>,
    } else {
    }
    %c0 = arith.constant 0 : index
    %c0_1 = arith.constant 0 : index
    %c0_2 = arith.constant 0 : index
    %c0_3 = arith.constant 0 : index
    %3 = vector.load %arg3[%c0, %c0_1, %c0_2, %c0_3] : memref<1x4x8x8xbf16, #tpu.memory_space<vmem>>, vector<1x4x8x8xbf16>
    %4 = vector.shape_cast %3 : vector<1x4x8x8xbf16> to vector<4x8x8xbf16>
    %c0_4 = arith.constant 0 : index
    %c0_5 = arith.constant 0 : index
    %c0_6 = arith.constant 0 : index
    %c0_7 = arith.constant 0 : index
    %5 = vector.load %arg4[%c0_4, %c0_5, %c0_6, %c0_7] : memref<1x4x8x8xbf16, #tpu.memory_space<vmem>>, vector<1x4x8x8xbf16>
    %6 = vector.shape_cast %5 : vector<1x4x8x8xbf16> to vector<4x8x8xbf16>
    %c0_8 = arith.constant 0 : index
    %c0_9 = arith.constant 0 : index
    %c0_10 = arith.constant 0 : index
    %c0_11 = arith.constant 0 : index
    %7 = vector.load %arg5[%c0_8, %c0_9, %c0_10, %c0_11] : memref<1x4x8x8xbf16, #tpu.memory_space<vmem>>, vector<1x4x8x8xbf16>
    %8 = vector.shape_cast %7 : vector<1x4x8x8xbf16> to vector<4x8x8xbf16>
    "tpu.trace_start"() <{level = 10 : i32, message = "hqd,hkd->hqk"}> : () -> ()
    %cst = arith.constant dense<0.000000e+00> : vector<4x8x8xf32>
    %9 = tpu.matmul %4, %6, %cst {dimension_numbers = #tpu.dot_dimension_numbers<[2], [2], [1], [1], [0, 0, 0, 1, 1, 1], [0], [0]>} : vector<4x8x8xbf16>, vector<4x8x8xbf16>, vector<4x8x8xf32> -> vector<4x8x8xf32>
    "tpu.trace_stop"() : () -> ()
    %c0_12 = arith.constant 0 : index
    %c0_13 = arith.constant 0 : index
    %c0_14 = arith.constant 0 : index
    %10 = vector.load %arg7[%c0_12, %c0_13, %c0_14] : memref<4x8x1xf32, #tpu.memory_space<vmem>>, vector<4x8x1xf32>
    %cst_15 = arith.constant dense<0xFF800000> : vector<4x8xf32>
    %11 = vector.multi_reduction <maximumf>, %9, %cst_15 [2] : vector<4x8x8xf32> to vector<4x8xf32>
    %12 = vector.shape_cast %11 : vector<4x8xf32> to vector<4x8x1xf32>
    %13 = arith.maximumf %10, %12 : vector<4x8x1xf32>
    %14 = arith.subf %10, %13 : vector<4x8x1xf32>
    %15 = math.exp %14 : vector<4x8x1xf32>
    %16 = vector.broadcast %13 : vector<4x8x1xf32> to vector<4x8x8xf32>
    %17 = arith.subf %9, %16 : vector<4x8x8xf32>
    %18 = math.exp %17 : vector<4x8x8xf32>
    %c0_16 = arith.constant 0 : index
    %c0_17 = arith.constant 0 : index
    %c0_18 = arith.constant 0 : index
    %19 = vector.load %arg8[%c0_16, %c0_17, %c0_18] : memref<4x8x1xf32, #tpu.memory_space<vmem>>, vector<4x8x1xf32>
    %20 = arith.mulf %15, %19 : vector<4x8x1xf32>
    %cst_19 = arith.constant dense<0.000000e+00> : vector<4x8xf32>
    %21 = vector.multi_reduction <add>, %18, %cst_19 [2] : vector<4x8x8xf32> to vector<4x8xf32>
    %22 = vector.shape_cast %21 : vector<4x8xf32> to vector<4x8x1xf32>
    %23 = arith.addf %20, %22 : vector<4x8x1xf32>
    %c0_20 = arith.constant 0 : index
    %c0_21 = arith.constant 0 : index
    %c0_22 = arith.constant 0 : index
    %24 = vector.load %arg8[%c0_20, %c0_21, %c0_22] : memref<4x8x1xf32, #tpu.memory_space<vmem>>, vector<4x8x1xf32>
    tpu.vector_store %arg8[%c0_20, %c0_21, %c0_22], %23 {strides = array<i32>} : memref<4x8x1xf32, #tpu.memory_space<vmem>>, vector<4x8x1xf32>,
    %c0_23 = arith.constant 0 : index
    %c0_24 = arith.constant 0 : index
    %c0_25 = arith.constant 0 : index
    %25 = vector.load %arg9[%c0_23, %c0_24, %c0_25] : memref<4x8x8xf32, #tpu.memory_space<vmem>>, vector<4x8x8xf32>
    %26 = vector.broadcast %15 : vector<4x8x1xf32> to vector<4x8x8xf32>
    %27 = arith.mulf %26, %25 : vector<4x8x8xf32>
    %28 = arith.truncf %18 : vector<4x8x8xf32> to vector<4x8x8xbf16>
    "tpu.trace_start"() <{level = 10 : i32, message = "hqk,hkv->hqv"}> : () -> ()
    %cst_26 = arith.constant dense<0.000000e+00> : vector<4x8x8xf32>
    %29 = tpu.matmul %28, %8, %cst_26 {dimension_numbers = #tpu.dot_dimension_numbers<[2], [1], [1], [2], [0, 0, 0, 1, 1, 2], [0], [0]>} : vector<4x8x8xbf16>, vector<4x8x8xbf16>, vector<4x8x8xf32> -> vector<4x8x8xf32>
    "tpu.trace_stop"() : () -> ()
    %30 = arith.addf %27, %29 : vector<4x8x8xf32>
    %c0_27 = arith.constant 0 : index
    %c0_28 = arith.constant 0 : index
    %c0_29 = arith.constant 0 : index
    %31 = vector.load %arg9[%c0_27, %c0_28, %c0_29] : memref<4x8x8xf32, #tpu.memory_space<vmem>>, vector<4x8x8xf32>
    tpu.vector_store %arg9[%c0_27, %c0_28, %c0_29], %30 {strides = array<i32>} : memref<4x8x8xf32, #tpu.memory_space<vmem>>, vector<4x8x8xf32>,
    %c0_30 = arith.constant 0 : index
    %c0_31 = arith.constant 0 : index
    %c0_32 = arith.constant 0 : index
    %32 = vector.load %arg7[%c0_30, %c0_31, %c0_32] : memref<4x8x1xf32, #tpu.memory_space<vmem>>, vector<4x8x1xf32>
    tpu.vector_store %arg7[%c0_30, %c0_31, %c0_32], %13 {strides = array<i32>} : memref<4x8x1xf32, #tpu.memory_space<vmem>>, vector<4x8x1xf32>,
    %c0_i32_33 = arith.constant 0 : i32
    %33 = arith.cmpi eq, %arg2, %c0_i32_33 : i32
    %34 = arith.extui %33 : i1 to i32
    %c0_i32_34 = arith.constant 0 : i32
    %35 = arith.cmpi ne, %34, %c0_i32_34 : i32
    scf.if %35 {
      %c0_35 = arith.constant 0 : index
      %c0_36 = arith.constant 0 : index
      %c0_37 = arith.constant 0 : index
      %36 = vector.load %arg9[%c0_35, %c0_36, %c0_37] : memref<4x8x8xf32, #tpu.memory_space<vmem>>, vector<4x8x8xf32>
      %c0_38 = arith.constant 0 : index
      %c0_39 = arith.constant 0 : index
      %c0_40 = arith.constant 0 : index
      %37 = vector.load %arg8[%c0_38, %c0_39, %c0_40] : memref<4x8x1xf32, #tpu.memory_space<vmem>>, vector<4x8x1xf32>
      %cst_41 = arith.constant 6.250000e-02 : f32
      %38 = vector.broadcast %cst_41 : f32 to vector<4x8x1xf32>
      %39 = arith.divf %38, %37 : vector<4x8x1xf32>
      %40 = vector.broadcast %39 : vector<4x8x1xf32> to vector<4x8x8xf32>
      %41 = arith.mulf %36, %40 : vector<4x8x8xf32>
      %42 = arith.truncf %41 : vector<4x8x8xf32> to vector<4x8x8xbf16>
      %c0_42 = arith.constant 0 : index
      %c0_43 = arith.constant 0 : index
      %c0_44 = arith.constant 0 : index
      %c0_45 = arith.constant 0 : index
      %43 = vector.load %arg6[%c0_42, %c0_43, %c0_44, %c0_45] : memref<1x4x8x8xbf16, #tpu.memory_space<vmem>>, vector<1x4x8x8xbf16>
      %44 = vector.shape_cast %43 : vector<1x4x8x8xbf16> to vector<4x8x8xbf16>
      %45 = vector.shape_cast %42 : vector<4x8x8xbf16> to vector<1x4x8x8xbf16>
      tpu.vector_store %arg6[%c0_42, %c0_43, %c0_44, %c0_45], %45 {strides = array<i32>} : memref<1x4x8x8xbf16, #tpu.memory_space<vmem>>, vector<1x4x8x8xbf16>,
    } else {
    }
    return
  }
  func.func @transform_0(%arg0: i32, %arg1: i32, %arg2: i32) -> (i32, i32, i32, i32) {
    %c0_i32 = arith.constant 0 : i32
    %c0_i32_0 = arith.constant 0 : i32
    %c0_i32_1 = arith.constant 0 : i32
    return %arg0, %c0_i32, %arg1, %c0_i32_0 : i32, i32, i32, i32
  }
  func.func @transform_1(%arg0: i32, %arg1: i32, %arg2: i32) -> (i32, i32, i32, i32) {
    %c0_i32 = arith.constant 0 : i32
    %c0_i32_0 = arith.constant 0 : i32
    %c0_i32_1 = arith.constant 0 : i32
    return %arg0, %c0_i32, %arg2, %c0_i32_0 : i32, i32, i32, i32
  }
  func.func @transform_2(%arg0: i32, %arg1: i32, %arg2: i32) -> (i32, i32, i32, i32) {
    %c0_i32 = arith.constant 0 : i32
    %c0_i32_0 = arith.constant 0 : i32
    %c0_i32_1 = arith.constant 0 : i32
    return %arg0, %c0_i32, %arg2, %c0_i32_0 : i32, i32, i32, i32
  }
  func.func @transform_3(%arg0: i32, %arg1: i32, %arg2: i32) -> (i32, i32, i32, i32) {
    %c0_i32 = arith.constant 0 : i32
    %c0_i32_0 = arith.constant 0 : i32
    %c0_i32_1 = arith.constant 0 : i32
    return %arg0, %c0_i32, %arg1, %c0_i32_0 : i32, i32, i32, i32
  }
}

</mosaic_0001>

<llo_original>
// kernel: tpu_custom_call.1
$region0: #{tpu_custom_call.1}
  #allocation0 [shape = 'u32[]', space=smem, size = 0x4, offset = 0x4, fixed_abs, tag = 'smem constant byte address 0x4 - core index']
  #allocation1 [shape = 'u32[72,128]{1,0:T(1,128)}', space=vmem, size = 0x9000, scoped, tag = 'internal scratch']
  #allocation2 [shape = 'f32[4,8,1]{2,1,0:T(8,128)}', space=vmem, size = 0x4000, scoped, tag = 'scratch operand']
  #allocation3 [shape = 'f32[4,8,1]{2,1,0:T(8,128)}', space=vmem, size = 0x4000, scoped, tag = 'scratch operand']
  #allocation4 [shape = 'f32[4,8,8]{2,1,0:T(8,128)}', space=vmem, size = 0x4000, scoped, tag = 'scratch operand']
  %s0 = inlined_call_operand.hbm [shape: bf16[2,4,8,8], index: 0, kind: input, shape index: {}]
  %s1 = inlined_call_operand.hbm [shape: bf16[2,4,8,8], index: 1, kind: input, shape index: {}]
  %s2 = inlined_call_operand.hbm [shape: bf16[2,4,8,8], index: 2, kind: input, shape index: {}]
  %s3 = inlined_call_operand.hbm [shape: bf16[2,4,8,8], index: 3, kind: output, shape index: {}]
  %s4 = sld [smem:[#allocation0]]
  $region65: #{tpu_custom_call.1} parent=0
    _
  %s6 = ssub.s32 1, %s4
  %s7 = scalar_select 0, %s6, %s4
  $region1: #{tpu_custom_call.1} parent=0
    #allocation5 [shape = 'u8[16384]{0}', space=vmem, size = 0x4000, scoped, tag = 'input window, operand 0']
    #allocation6 [shape = 's32[2]{0}', space=sflag, size = 0x8, scoped, tag = 'scoped memory for tpu_custom_call.1']
    #allocation7 [shape = 's32[2]{0}', space=sflag, size = 0x8, scoped, tag = 'scoped memory for tpu_custom_call.1']
    #allocation8 [shape = 'u8[16384]{0}', space=vmem, size = 0x4000, scoped, tag = 'input window, operand 1']
    #allocation9 [shape = 's32[2]{0}', space=sflag, size = 0x8, scoped, tag = 'scoped memory for tpu_custom_call.1']
    #allocation10 [shape = 'u8[16384]{0}', space=vmem, size = 0x4000, scoped, tag = 'input window, operand 2']
    #allocation11 [shape = 'u8[16384]{0}', space=vmem, size = 0x4000, scoped, tag = 'output window, operand 0']
    %8 = vsyncpa [#allocation6], 0
    %s9 = scalar_lea.sflag [#allocation6], 1
    %10 = vsyncpa %s9, 0
    %11 = vsyncpa [#allocation9], 0
    %s12 = scalar_lea.sflag [#allocation9], 1
    %13 = vsyncpa %s12, 0
    %14 = vsyncpa [#allocation7], 0
    %s15 = scalar_lea.sflag [#allocation7], 1
    %16 = vsyncpa %s15, 0
    loop: start=0, step=1, limit=4
    $region2: #{tpu_custom_call.1} parent=1 // loop_pre_header
      _
    $region3: #{tpu_custom_call.1} parent=1 // loop_header
      %s18 = sphi 0, %s22
      %p19 = scmp.ge.s32.totalorder %s18, 4
      %s25 = sphi 0, %s44
      %s26 = sphi 0, %s40
      %s27 = sphi 0, %s36
      %s28 = sphi 0, %s25
      %s29 = sphi 0, %s26
      %s30 = sphi 0, %s27
      %s31 = sphi 0, %s28
      %s32 = sphi 0, %s29
      %s33 = sphi 0, %s30
      %s49 = sphi 0, %s51
      %s52 = sphi 0, %s49
      %s53 = sphi 0, %s52
      %s69 = sphi 0, %s53
      %s77 = sphi 0, %s79
      %s80 = sphi 0, %s77
      %s81 = sphi 0, %s80
      %s97 = sphi 0, %s81
      %s105 = sphi 0, %s107
      %s108 = sphi 0, %s105
      %s109 = sphi 0, %s108
      %s125 = sphi 0, %s109
      %s133 = sphi 0, %s135
      %s136 = sphi 0, %s133
      %s137 = sphi 0, %s136
      %s153 = sphi 0, %s137
    $region4: #{tpu_custom_call.1} parent=1 // loop_header_branch
      %21 = sbr.rel (%p19) target = $region8
    $region5: #{tpu_custom_call.1} parent=1 // loop_body
      %s23 = ssub.s32 %s18, 1
      %s24 = ssub.s32 %s18, 2
      %s34 = sadd.s32 1, %s27
      %p35 = scmp.ge.s32.totalorder %s34, 1
      %s36 = scalar_select %p35, 0, %s34
      %s37 = sadd.s32 1, %s26
      %s38 = scalar_select %p35, %s37, %s26
      %p39 = scmp.ge.s32.totalorder %s38, 1
      %s40 = scalar_select %p39, 0, %s38
      %s41 = sadd.s32 1, %s25
      %s42 = scalar_select %p39, %s41, %s25
      %p43 = scmp.ge.s32.totalorder %s42, 2
      %s44 = scalar_select %p43, 0, %s42
      %s45 = ssub.s32 %s25, %s44
      %s46 = ssub.s32 %s26, %s40
      %s47 = sor.u32 %s45, %s46
      %p48 = scmp.eq.s32.totalorder %s47, 0
      %s50 = sadd.s32 %s49, 1
      %s51 = scalar_select %p48, %s49, %s50
      %p54 = pneg %p48
      %p55 = scmp.eq.s32.totalorder %s18, 1
      %p56 = por %p54, %p55
      %p57 = scmp.ne.s32.totalorder %s49, %s52
      %p58 = scmp.eq.s32.totalorder %s18, 0
      %p59 = por %p57, %p58
      %p60 = scmp.ne.s32.totalorder %s49, %s52
      %p61 = scmp.eq.s32.totalorder %s23, 1
      %p62 = por %p60, %p61
      %p63 = scmp.ne.s32.totalorder %s52, %s53
      %p64 = scmp.eq.s32.totalorder %s23, 0
      %p65 = por %p63, %p64
      %p66 = scmp.ne.s32.totalorder %s52, %s53
      %p67 = scmp.eq.s32.totalorder %s24, 1
      %p68 = por %p66, %p67
      %p70 = scmp.ne.s32.totalorder %s53, %s69
      %p71 = scmp.eq.s32.totalorder %s24, 0
      %p72 = por %p70, %p71
      %s73 = ssub.s32 %s25, %s44
      %s74 = ssub.s32 %s27, %s36
      %s75 = sor.u32 %s73, %s74
      %p76 = scmp.eq.s32.totalorder %s75, 0
      %s78 = sadd.s32 %s77, 1
      %s79 = scalar_select %p76, %s77, %s78
      %p82 = pneg %p76
      %p83 = scmp.eq.s32.totalorder %s18, 1
      %p84 = por %p82, %p83
      %p85 = scmp.ne.s32.totalorder %s77, %s80
      %p86 = scmp.eq.s32.totalorder %s18, 0
      %p87 = por %p85, %p86
      %p88 = scmp.ne.s32.totalorder %s77, %s80
      %p89 = scmp.eq.s32.totalorder %s23, 1
      %p90 = por %p88, %p89
      %p91 = scmp.ne.s32.totalorder %s80, %s81
      %p92 = scmp.eq.s32.totalorder %s23, 0
      %p93 = por %p91, %p92
      %p94 = scmp.ne.s32.totalorder %s80, %s81
      %p95 = scmp.eq.s32.totalorder %s24, 1
      %p96 = por %p94, %p95
      %p98 = scmp.ne.s32.totalorder %s81, %s97
      %p99 = scmp.eq.s32.totalorder %s24, 0
      %p100 = por %p98, %p99
      %s101 = ssub.s32 %s25, %s44
      %s102 = ssub.s32 %s27, %s36
      %s103 = sor.u32 %s101, %s102
      %p104 = scmp.eq.s32.totalorder %s103, 0
      %s106 = sadd.s32 %s105, 1
      %s107 = scalar_select %p104, %s105, %s106
      %p110 = pneg %p104
      %p111 = scmp.eq.s32.totalorder %s18, 1
      %p112 = por %p110, %p111
      %p113 = scmp.ne.s32.totalorder %s105, %s108
      %p114 = scmp.eq.s32.totalorder %s18, 0
      %p115 = por %p113, %p114
      %p116 = scmp.ne.s32.totalorder %s105, %s108
      %p117 = scmp.eq.s32.totalorder %s23, 1
      %p118 = por %p116, %p117
      %p119 = scmp.ne.s32.totalorder %s108, %s109
      %p120 = scmp.eq.s32.totalorder %s23, 0
      %p121 = por %p119, %p120
      %p122 = scmp.ne.s32.totalorder %s108, %s109
      %p123 = scmp.eq.s32.totalorder %s24, 1
      %p124 = por %p122, %p123
      %p126 = scmp.ne.s32.totalorder %s109, %s125
      %p127 = scmp.eq.s32.totalorder %s24, 0
      %p128 = por %p126, %p127
      %s129 = ssub.s32 %s25, %s44
      %s130 = ssub.s32 %s26, %s40
      %s131 = sor.u32 %s129, %s130
      %p132 = scmp.eq.s32.totalorder %s131, 0
      %s134 = sadd.s32 %s133, 1
      %s135 = scalar_select %p132, %s133, %s134
      %p138 = pneg %p132
      %p139 = scmp.eq.s32.totalorder %s18, 1
      %p140 = por %p138, %p139
      %p141 = scmp.ne.s32.totalorder %s133, %s136
      %p142 = scmp.eq.s32.totalorder %s18, 0
      %p143 = por %p141, %p142
      %p144 = scmp.ne.s32.totalorder %s133, %s136
      %p145 = scmp.eq.s32.totalorder %s23, 1
      %p146 = por %p144, %p145
      %p147 = scmp.ne.s32.totalorder %s136, %s137
      %p148 = scmp.eq.s32.totalorder %s23, 0
      %p149 = por %p147, %p148
      %p150 = scmp.ne.s32.totalorder %s136, %s137
      %p151 = scmp.eq.s32.totalorder %s24, 1
      %p152 = por %p150, %p151
      %p154 = scmp.ne.s32.totalorder %s137, %s153
      %p155 = scmp.eq.s32.totalorder %s24, 0
      %p156 = por %p154, %p155
      %p157 = scmp.le.s32.totalorder 1, %s18
      %p158 = scmp.lt.s32.totalorder %s18, 3
      %p159 = pnand %p157, %p158
      %p160 = pneg %p159
      // Predicated region
      $region9: #{tpu_custom_call.1} parent=5 // pred_check
        _
      $region10: #{tpu_custom_call.1} parent=5 // pred_check_branch
        %162 = sbr.rel (%p159) target = $region12
      $region11: #{tpu_custom_call.1} parent=5 // pred_region
        %s163 = ssub.s32 %s18, 1
      $region12: #{tpu_custom_call.1} parent=5 // pred_fallthru
        _
      %p164 = scmp.lt.s32.totalorder %s18, 2
      // Predicated region
      $region13: #{tpu_custom_call.1} parent=5 // pred_check
        %p165 = pneg %p164
      $region14: #{tpu_custom_call.1} parent=5 // pred_check_branch
        %167 = sbr.rel (%p165) target = $region16
      $region15: #{tpu_custom_call.1} parent=5 // pred_region
        // Predicated region
        $region17: #{tpu_custom_call.1} parent=15 // pred_check
          %p168 = pneg %p59
        $region18: #{tpu_custom_call.1} parent=15 // pred_check_branch
          %170 = sbr.rel (%p168) target = $region20
        $region19: #{tpu_custom_call.1} parent=15 // pred_region
          %s171 = sand.u32 %s49, 1
          %s172 = scalar_lea.sflag [#allocation6], %s171
          %s173 = sand.u32 %s49, 1
          %s174 = smul.addr %s173, 16
          %s175 = scalar_lea.vmem [#allocation5], %s174
          %177 = vsyncadd %s172, 0
          %s178 = smul.addr %s25, 4
          %s179 = sadd.s32 %s26, %s178
          %s180 = smul.addr %s179, 4
          %s181 = scalar_lea.hbm %s0, %s180
          %s182 = sshll.u32 %s181, 4
          %s183 = int_to_ptr.hbm [resolvable:$true] %s182
          %s184 = sshll.u32 %s175, 4
          %s185 = int_to_ptr.vmem [resolvable:$true] %s184
          %190 = dma.hbm_to_vmem [thread:$0]  %s183, 256, %s185, %s172, 64, 64, 4
        $region20: #{tpu_custom_call.1} parent=15 // pred_fallthru
          _
        // Predicated region
        $region21: #{tpu_custom_call.1} parent=15 // pred_check
          %p191 = pneg %p87
        $region22: #{tpu_custom_call.1} parent=15 // pred_check_branch
          %193 = sbr.rel (%p191) target = $region24
        $region23: #{tpu_custom_call.1} parent=15 // pred_region
          %s194 = sand.u32 %s18, 1
          %s195 = scalar_lea.sflag [#allocation9], %s194
          %s196 = sand.u32 %s77, 1
          %s197 = smul.addr %s196, 16
          %s198 = scalar_lea.vmem [#allocation8], %s197
          %200 = vsyncadd %s195, 0
          %s201 = smul.addr %s25, 4
          %s202 = sadd.s32 %s27, %s201
          %s203 = smul.addr %s202, 4
          %s204 = scalar_lea.hbm %s1, %s203
          %s205 = sshll.u32 %s204, 4
          %s206 = int_to_ptr.hbm [resolvable:$true] %s205
          %s207 = sshll.u32 %s198, 4
          %s208 = int_to_ptr.vmem [resolvable:$true] %s207
          %213 = dma.hbm_to_vmem [thread:$0]  %s206, 256, %s208, %s195, 64, 64, 4
        $region24: #{tpu_custom_call.1} parent=15 // pred_fallthru
          _
        // Predicated region
        $region25: #{tpu_custom_call.1} parent=15 // pred_check
          %p214 = pneg %p115
        $region26: #{tpu_custom_call.1} parent=15 // pred_check_branch
          %216 = sbr.rel (%p214) target = $region28
        $region27: #{tpu_custom_call.1} parent=15 // pred_region
          %s217 = sand.u32 %s18, 1
          %s218 = scalar_lea.sflag [#allocation9], %s217
          %s219 = sand.u32 %s105, 1
          %s220 = smul.addr %s219, 16
          %s221 = scalar_lea.vmem [#allocation10], %s220
          %223 = vsyncadd %s218, 0
          %s224 = smul.addr %s25, 4
          %s225 = sadd.s32 %s27, %s224
          %s226 = smul.addr %s225, 4
          %s227 = scalar_lea.hbm %s2, %s226
          %s228 = sshll.u32 %s227, 4
          %s229 = int_to_ptr.hbm [resolvable:$true] %s228
          %s230 = sshll.u32 %s221, 4
          %s231 = int_to_ptr.vmem [resolvable:$true] %s230
          %236 = dma.hbm_to_vmem [thread:$0]  %s229, 256, %s231, %s218, 64, 64, 4
        $region28: #{tpu_custom_call.1} parent=15 // pred_fallthru
          _
      $region16: #{tpu_custom_call.1} parent=5 // pred_fallthru
        _
      %p237 = scmp.le.s32.totalorder 1, %s18
      %p238 = scmp.lt.s32.totalorder %s18, 3
      %p239 = pnand %p237, %p238
      %p240 = pneg %p239
      // Predicated region
      $region29: #{tpu_custom_call.1} parent=5 // pred_check
        _
      $region30: #{tpu_custom_call.1} parent=5 // pred_check_branch
        %242 = sbr.rel (%p239) target = $region32
      $region31: #{tpu_custom_call.1} parent=5 // pred_region
        %s243 = ssub.s32 %s18, 1
        %s244 = sand.u32 %s52, 1
        %s245 = scalar_lea.sflag [#allocation6], %s244
        %s246 = sand.u32 %s52, 1
        %s247 = smul.addr %s246, 16
        %s248 = scalar_lea.vmem [#allocation5], %s247
        // Predicated region
        $region33: #{tpu_custom_call.1} parent=31 // pred_check
          %p249 = pneg %p65
        $region34: #{tpu_custom_call.1} parent=31 // pred_check_branch
          %251 = sbr.rel (%p249) target = $region36
        $region35: #{tpu_custom_call.1} parent=31 // pred_region
          %253 = dma.done %s245, 256
        $region36: #{tpu_custom_call.1} parent=31 // pred_fallthru
          _
        %s254 = sand.u32 %s23, 1
        %s255 = scalar_lea.sflag [#allocation9], %s254
        %s256 = sand.u32 %s80, 1
        %s257 = smul.addr %s256, 16
        %s258 = scalar_lea.vmem [#allocation8], %s257
        // Predicated region
        $region37: #{tpu_custom_call.1} parent=31 // pred_check
          %p259 = pneg %p93
        $region38: #{tpu_custom_call.1} parent=31 // pred_check_branch
          %261 = sbr.rel (%p259) target = $region40
        $region39: #{tpu_custom_call.1} parent=31 // pred_region
          %263 = dma.done %s255, 256
        $region40: #{tpu_custom_call.1} parent=31 // pred_fallthru
          _
        %s264 = sand.u32 %s23, 1
        %s265 = scalar_lea.sflag [#allocation9], %s264
        %s266 = sand.u32 %s108, 1
        %s267 = smul.addr %s266, 16
        %s268 = scalar_lea.vmem [#allocation10], %s267
        // Predicated region
        $region41: #{tpu_custom_call.1} parent=31 // pred_check
          %p269 = pneg %p121
        $region42: #{tpu_custom_call.1} parent=31 // pred_check_branch
          %271 = sbr.rel (%p269) target = $region44
        $region43: #{tpu_custom_call.1} parent=31 // pred_region
          %273 = dma.done %s265, 256
        $region44: #{tpu_custom_call.1} parent=31 // pred_fallthru
          _
        %s274 = sand.u32 %s52, 1
        %s275 = scalar_lea.sflag [#allocation6], %s274
        %s276 = sand.u32 %s52, 1
        %s277 = smul.addr %s276, 16
        %s278 = scalar_lea.vmem [#allocation5], %s277
        %p279 = pneg %p65
        %p280 = pneg %p62
        %s281 = sand.u32 %s23, 1
        %s282 = scalar_lea.sflag [#allocation9], %s281
        %s283 = sand.u32 %s80, 1
        %s284 = smul.addr %s283, 16
        %s285 = scalar_lea.vmem [#allocation8], %s284
        %p286 = pneg %p93
        %p287 = pneg %p90
        %s288 = sand.u32 %s23, 1
        %s289 = scalar_lea.sflag [#allocation9], %s288
        %s290 = sand.u32 %s108, 1
        %s291 = smul.addr %s290, 16
        %s292 = scalar_lea.vmem [#allocation10], %s291
        %p293 = pneg %p121
        %p294 = pneg %p118
        %p295 = pneg %p149
        %p296 = pneg %p146
        %s297 = sand.u32 %s136, 1
        %s298 = scalar_lea.sflag [#allocation7], %s297
        %s299 = sand.u32 %s136, 1
        %s300 = smul.addr %s299, 16
        %s301 = scalar_lea.vmem [#allocation11], %s300
        %p303 = scmp.eq.s32.totalorder %s30, 0
        // Predicated region
        $region45: #{tpu_custom_call.1} parent=31 // pred_check
          %p304 = pneg %p303
        $region46: #{tpu_custom_call.1} parent=31 // pred_check_branch
          %306 = sbr.rel (%p304) target = $region48
        $region47: #{tpu_custom_call.1} parent=31 // pred_region
          %vm307 = vcmask 7168
          %308 = vst.msk [vmem:[#allocation2] sm:$0xff] %vm307, -inf
          %309 = vst.msk [vmem:[#allocation2 + $0x8] sm:$0xff] %vm307, -inf
          %310 = vst.msk [vmem:[#allocation2 + $0x10] sm:$0xff] %vm307, -inf
          %311 = vst.msk [vmem:[#allocation2 + $0x18] sm:$0xff] %vm307, -inf
          %312 = vst.msk [vmem:[#allocation3] sm:$0xff] %vm307, 0.0
          %313 = vst.msk [vmem:[#allocation3 + $0x8] sm:$0xff] %vm307, 0.0
          %314 = vst.msk [vmem:[#allocation3 + $0x10] sm:$0xff] %vm307, 0.0
          %315 = vst.msk [vmem:[#allocation3 + $0x18] sm:$0xff] %vm307, 0.0
          %vm316 = vcmask 64512
          %317 = vst.msk [vmem:[#allocation4] sm:$0xff] %vm316, 0.0
          %318 = vst.msk [vmem:[#allocation4 + $0x8] sm:$0xff] %vm316, 0.0
          %319 = vst.msk [vmem:[#allocation4 + $0x10] sm:$0xff] %vm316, 0.0
          %320 = vst.msk [vmem:[#allocation4 + $0x18] sm:$0xff] %vm316, 0.0
        $region48: #{tpu_custom_call.1} parent=31 // pred_fallthru
          _
        %v321 = vld [vmem:[%s248] sm:$0xf]
        %v322 = vld [vmem:[%s248 + $0x4] sm:$0xf]
        %v323 = vld [vmem:[%s248 + $0x8] sm:$0xf]
        %v324 = vld [vmem:[%s248 + $0xc] sm:$0xf]
        %v325 = vld [vmem:[%s258] sm:$0xf]
        %v326 = vld [vmem:[%s258 + $0x4] sm:$0xf]
        %v327 = vld [vmem:[%s258 + $0x8] sm:$0xf]
        %v328 = vld [vmem:[%s258 + $0xc] sm:$0xf]
        %v329 = vld [vmem:[%s268] sm:$0xf]
        %v330 = vld [vmem:[%s268 + $0x4] sm:$0xf]
        %v331 = vld [vmem:[%s268 + $0x8] sm:$0xf]
        %v332 = vld [vmem:[%s268 + $0xc] sm:$0xf]
        %vm333 = vcmask 64512
        %v335 = vsel %vm333, %v321, 0
        %v338 = vsel %vm333, %v325, 0
        %340 = vmatpush.bf16.xpose.msra.mxu0 0
        %341 = vmatpush.bf16.xpose.msra.mxu0 0
        %342 = vmatpush.bf16.xpose.msra.mxu0 0
        %343 = vmatpush.bf16.xpose.msra.mxu0 0
        %344 = vmatpush.bf16.xpose.msra.mxu0 0
        %345 = vmatpush.bf16.xpose.msra.mxu0 0
        %346 = vmatpush.bf16.xpose.msra.mxu0 0
        %347 = vmatpush.bf16.xpose.msra.mxu0 %v338
        %348 = vmatmul.bf16.gmra.mxu0 %v335
        %v349 = vpop.f32.mrf.mxu0
        %v350 = vadd.f32 0.0, %v349
        %v351 = vpop.f32.mrf.mxu0
        %352 = vdwg.mxu0
        %v354 = vsel %vm333, %v322, 0
        %v357 = vsel %vm333, %v326, 0
        %359 = vmatpush.bf16.xpose.msra.mxu0 0
        %360 = vmatpush.bf16.xpose.msra.mxu0 0
        %361 = vmatpush.bf16.xpose.msra.mxu0 0
        %362 = vmatpush.bf16.xpose.msra.mxu0 0
        %363 = vmatpush.bf16.xpose.msra.mxu0 0
        %364 = vmatpush.bf16.xpose.msra.mxu0 0
        %365 = vmatpush.bf16.xpose.msra.mxu0 0
        %366 = vmatpush.bf16.xpose.msra.mxu0 %v357
        %367 = vmatmul.bf16.gmra.mxu0 %v354
        %v368 = vpop.f32.mrf.mxu0
        %v369 = vadd.f32 0.0, %v368
        %v370 = vpop.f32.mrf.mxu0
        %371 = vdwg.mxu0
        %v373 = vsel %vm333, %v323, 0
        %v376 = vsel %vm333, %v327, 0
        %378 = vmatpush.bf16.xpose.msra.mxu0 0
        %379 = vmatpush.bf16.xpose.msra.mxu0 0
        %380 = vmatpush.bf16.xpose.msra.mxu0 0
        %381 = vmatpush.bf16.xpose.msra.mxu0 0
        %382 = vmatpush.bf16.xpose.msra.mxu0 0
        %383 = vmatpush.bf16.xpose.msra.mxu0 0
        %384 = vmatpush.bf16.xpose.msra.mxu0 0
        %385 = vmatpush.bf16.xpose.msra.mxu0 %v376
        %386 = vmatmul.bf16.gmra.mxu0 %v373
        %v387 = vpop.f32.mrf.mxu0
        %v388 = vadd.f32 0.0, %v387
        %v389 = vpop.f32.mrf.mxu0
        %390 = vdwg.mxu0
        %v392 = vsel %vm333, %v324, 0
        %v395 = vsel %vm333, %v328, 0
        %397 = vmatpush.bf16.xpose.msra.mxu0 0
        %398 = vmatpush.bf16.xpose.msra.mxu0 0
        %399 = vmatpush.bf16.xpose.msra.mxu0 0
        %400 = vmatpush.bf16.xpose.msra.mxu0 0
        %401 = vmatpush.bf16.xpose.msra.mxu0 0
        %402 = vmatpush.bf16.xpose.msra.mxu0 0
        %403 = vmatpush.bf16.xpose.msra.mxu0 0
        %404 = vmatpush.bf16.xpose.msra.mxu0 %v395
        %405 = vmatmul.bf16.gmra.mxu0 %v392
        %v406 = vpop.f32.mrf.mxu0
        %v407 = vadd.f32 0.0, %v406
        %v408 = vpop.f32.mrf.mxu0
        %409 = vdwg.mxu0
        %v410 = vld [vmem:[#allocation2] sm:$0xff]
        %v411 = vld [vmem:[#allocation2 + $0x8] sm:$0xff]
        %v412 = vld [vmem:[#allocation2 + $0x10] sm:$0xff]
        %v413 = vld [vmem:[#allocation2 + $0x18] sm:$0xff]
        %v414 = vsel %vm333, %v350, -inf
        %415 = vmax.xlane.f32.xlu0 %v414
        %v416 = vpop.xlane.xlu0 %415
        %v417 = vsel %vm333, %v369, -inf
        %418 = vmax.xlane.f32.xlu0 %v417
        %v419 = vpop.xlane.xlu0 %418
        %v420 = vsel %vm333, %v388, -inf
        %421 = vmax.xlane.f32.xlu0 %v420
        %v422 = vpop.xlane.xlu0 %421
        %v423 = vsel %vm333, %v407, -inf
        %424 = vmax.xlane.f32.xlu0 %v423
        %v425 = vpop.xlane.xlu0 %424
        %v426 = vmax.f32 %v410, %v416
        %v427 = vmax.f32 %v411, %v419
        %v428 = vmax.f32 %v412, %v422
        %v429 = vmax.f32 %v413, %v425
        %v430 = vsub.f32 %v410, %v426
        %v431 = vsub.f32 %v411, %v427
        %v432 = vsub.f32 %v412, %v428
        %v433 = vsub.f32 %v413, %v429
        %v434 = vmul.f32 %v430, 1.442695
        %v435 = vpow.pop %v434
        %v436 = vmul.f32 %v431, 1.442695
        %v437 = vpow.pop %v436
        %v438 = vmul.f32 %v432, 1.442695
        %v439 = vpow.pop %v438
        %v440 = vmul.f32 %v433, 1.442695
        %v441 = vpow.pop %v440
        %443 = vset.pattern.permute.xlu0 0
        %444 = vperm.xlu0 %443, %v426
        %v445 = vpop.permute.xlu0 %444
        %448 = vset.pattern.permute.xlu0 0
        %449 = vperm.xlu0 %448, %v427
        %v450 = vpop.permute.xlu0 %449
        %453 = vset.pattern.permute.xlu0 0
        %454 = vperm.xlu0 %453, %v428
        %v455 = vpop.permute.xlu0 %454
        %458 = vset.pattern.permute.xlu0 0
        %459 = vperm.xlu0 %458, %v429
        %v460 = vpop.permute.xlu0 %459
        %v462 = vsub.f32 %v350, %v445
        %v463 = vsub.f32 %v369, %v450
        %v464 = vsub.f32 %v388, %v455
        %v465 = vsub.f32 %v407, %v460
        %v466 = vmul.f32 %v462, 1.442695
        %v467 = vpow.pop %v466
        %v468 = vmul.f32 %v463, 1.442695
        %v469 = vpow.pop %v468
        %v470 = vmul.f32 %v464, 1.442695
        %v471 = vpow.pop %v470
        %v472 = vmul.f32 %v465, 1.442695
        %v473 = vpow.pop %v472
        %v474 = vld [vmem:[#allocation3] sm:$0xff]
        %v475 = vld [vmem:[#allocation3 + $0x8] sm:$0xff]
        %v476 = vld [vmem:[#allocation3 + $0x10] sm:$0xff]
        %v477 = vld [vmem:[#allocation3 + $0x18] sm:$0xff]
        %v478 = vmul.f32 %v435, %v474
        %v479 = vmul.f32 %v437, %v475
        %v480 = vmul.f32 %v439, %v476
        %v481 = vmul.f32 %v441, %v477
        %v482 = vsel %vm333, %v467, 0.0
        %483 = vadd.xlane.f32.xlu0 %v482
        %v484 = vpop.xlane.xlu0 %483
        %v485 = vsel %vm333, %v469, 0.0
        %486 = vadd.xlane.f32.xlu0 %v485
        %v487 = vpop.xlane.xlu0 %486
        %v488 = vsel %vm333, %v471, 0.0
        %489 = vadd.xlane.f32.xlu0 %v488
        %v490 = vpop.xlane.xlu0 %489
        %v491 = vsel %vm333, %v473, 0.0
        %492 = vadd.xlane.f32.xlu0 %v491
        %v493 = vpop.xlane.xlu0 %492
        %v494 = vadd.f32 %v478, %v484
        %v495 = vadd.f32 %v479, %v487
        %v496 = vadd.f32 %v480, %v490
        %v497 = vadd.f32 %v481, %v493
        %vm498 = vcmask 7168
        %499 = vst.msk [vmem:[#allocation3] sm:$0xff] %vm498, %v494
        %500 = vst.msk [vmem:[#allocation3 + $0x8] sm:$0xff] %vm498, %v495
        %501 = vst.msk [vmem:[#allocation3 + $0x10] sm:$0xff] %vm498, %v496
        %502 = vst.msk [vmem:[#allocation3 + $0x18] sm:$0xff] %vm498, %v497
        %v503 = vld [vmem:[#allocation4] sm:$0xff]
        %v504 = vld [vmem:[#allocation4 + $0x8] sm:$0xff]
        %v505 = vld [vmem:[#allocation4 + $0x10] sm:$0xff]
        %v506 = vld [vmem:[#allocation4 + $0x18] sm:$0xff]
        %508 = vset.pattern.permute.xlu0 0
        %509 = vperm.xlu0 %508, %v435
        %v510 = vpop.permute.xlu0 %509
        %513 = vset.pattern.permute.xlu0 0
        %514 = vperm.xlu0 %513, %v437
        %v515 = vpop.permute.xlu0 %514
        %518 = vset.pattern.permute.xlu0 0
        %519 = vperm.xlu0 %518, %v439
        %v520 = vpop.permute.xlu0 %519
        %523 = vset.pattern.permute.xlu0 0
        %524 = vperm.xlu0 %523, %v441
        %v525 = vpop.permute.xlu0 %524
        %v527 = vmul.f32 %v510, %v503
        %v528 = vmul.f32 %v515, %v504
        %v529 = vmul.f32 %v520, %v505
        %v530 = vmul.f32 %v525, %v506
        %v531 = vpack.c.bf16 %v467, %v467
        %v532 = vpack.c.bf16 %v469, %v469
        %v533 = vpack.c.bf16 %v471, %v471
        %v534 = vpack.c.bf16 %v473, %v473
        %v536 = vsel %vm333, %v531, 0
        %vm538 = vcmask 1043456
        %v540 = vsel %vm538, %v329, 0
        %542 = vmatpush.bf16.msra.mxu0 0
        %543 = vmatpush.bf16.msra.mxu0 0
        %544 = vmatpush.bf16.msra.mxu0 0
        %545 = vmatpush.bf16.msra.mxu0 0
        %546 = vmatpush.bf16.msra.mxu0 0
        %547 = vmatpush.bf16.msra.mxu0 0
        %548 = vmatpush.bf16.msra.mxu0 0
        %549 = vmatpush.bf16.msra.mxu0 %v540
        %550 = vmatmul.bf16.gmra.mxu0 %v536
        %v551 = vpop.f32.mrf.mxu0
        %v552 = vadd.f32 0.0, %v551
        %v553 = vpop.f32.mrf.mxu0
        %554 = vdwg.mxu0
        %v556 = vsel %vm333, %v532, 0
        %v559 = vsel %vm538, %v330, 0
        %561 = vmatpush.bf16.msra.mxu0 0
        %562 = vmatpush.bf16.msra.mxu0 0
        %563 = vmatpush.bf16.msra.mxu0 0
        %564 = vmatpush.bf16.msra.mxu0 0
        %565 = vmatpush.bf16.msra.mxu0 0
        %566 = vmatpush.bf16.msra.mxu0 0
        %567 = vmatpush.bf16.msra.mxu0 0
        %568 = vmatpush.bf16.msra.mxu0 %v559
        %569 = vmatmul.bf16.gmra.mxu0 %v556
        %v570 = vpop.f32.mrf.mxu0
        %v571 = vadd.f32 0.0, %v570
        %v572 = vpop.f32.mrf.mxu0
        %573 = vdwg.mxu0
        %v575 = vsel %vm333, %v533, 0
        %v578 = vsel %vm538, %v331, 0
        %580 = vmatpush.bf16.msra.mxu0 0
        %581 = vmatpush.bf16.msra.mxu0 0
        %582 = vmatpush.bf16.msra.mxu0 0
        %583 = vmatpush.bf16.msra.mxu0 0
        %584 = vmatpush.bf16.msra.mxu0 0
        %585 = vmatpush.bf16.msra.mxu0 0
        %586 = vmatpush.bf16.msra.mxu0 0
        %587 = vmatpush.bf16.msra.mxu0 %v578
        %588 = vmatmul.bf16.gmra.mxu0 %v575
        %v589 = vpop.f32.mrf.mxu0
        %v590 = vadd.f32 0.0, %v589
        %v591 = vpop.f32.mrf.mxu0
        %592 = vdwg.mxu0
        %v594 = vsel %vm333, %v534, 0
        %v597 = vsel %vm538, %v332, 0
        %599 = vmatpush.bf16.msra.mxu0 0
        %600 = vmatpush.bf16.msra.mxu0 0
        %601 = vmatpush.bf16.msra.mxu0 0
        %602 = vmatpush.bf16.msra.mxu0 0
        %603 = vmatpush.bf16.msra.mxu0 0
        %604 = vmatpush.bf16.msra.mxu0 0
        %605 = vmatpush.bf16.msra.mxu0 0
        %606 = vmatpush.bf16.msra.mxu0 %v597
        %607 = vmatmul.bf16.gmra.mxu0 %v594
        %v608 = vpop.f32.mrf.mxu0
        %v609 = vadd.f32 0.0, %v608
        %v610 = vpop.f32.mrf.mxu0
        %611 = vdwg.mxu0
        %v612 = vadd.f32 %v527, %v552
        %v613 = vadd.f32 %v528, %v571
        %v614 = vadd.f32 %v529, %v590
        %v615 = vadd.f32 %v530, %v609
        %616 = vst.msk [vmem:[#allocation4] sm:$0xff] %vm333, %v612
        %617 = vst.msk [vmem:[#allocation4 + $0x8] sm:$0xff] %vm333, %v613
        %618 = vst.msk [vmem:[#allocation4 + $0x10] sm:$0xff] %vm333, %v614
        %619 = vst.msk [vmem:[#allocation4 + $0x18] sm:$0xff] %vm333, %v615
        %620 = vst.msk [vmem:[#allocation2] sm:$0xff] %vm498, %v426
        %621 = vst.msk [vmem:[#allocation2 + $0x8] sm:$0xff] %vm498, %v427
        %622 = vst.msk [vmem:[#allocation2 + $0x10] sm:$0xff] %vm498, %v428
        %623 = vst.msk [vmem:[#allocation2 + $0x18] sm:$0xff] %vm498, %v429
        // Predicated region
        $region49: #{tpu_custom_call.1} parent=31 // pred_check
          %p624 = pneg %p303
        $region50: #{tpu_custom_call.1} parent=31 // pred_check_branch
          %626 = sbr.rel (%p624) target = $region52
        $region51: #{tpu_custom_call.1} parent=31 // pred_region
          %v627 = vld [vmem:[#allocation4] sm:$0xff]
          %v628 = vld [vmem:[#allocation4 + $0x8] sm:$0xff]
          %v629 = vld [vmem:[#allocation4 + $0x10] sm:$0xff]
          %v630 = vld [vmem:[#allocation4 + $0x18] sm:$0xff]
          %v631 = vld [vmem:[#allocation3] sm:$0xff]
          %v632 = vld [vmem:[#allocation3 + $0x8] sm:$0xff]
          %v633 = vld [vmem:[#allocation3 + $0x10] sm:$0xff]
          %v634 = vld [vmem:[#allocation3 + $0x18] sm:$0xff]
          %v635 = vrcp.pop %v631
          %v636 = vmul.f32 %v631, %v635
          %v637 = vsub.f32 1.0, %v636
          %v638 = vmul.f32 %v635, %v637
          %v639 = vadd.f32 %v635, %v638
          %vm640 = vweird.f32 %v631
          %vm641 = vweird.f32 %v635
          %vm642 = vmor %vm640, %vm641
          %v643 = vsel %vm642, %v635, %v639
          %v644 = vand.u32 2147483647, %v631
          %vm645 = vcmp.eq.f32.partialorder %v644, 8.507059e+37
          %v646 = vand.u32 %v631, 2147483648
          %v647 = vor.u32 1.1754944e-38, %v646
          %v648 = vsel %vm645, %v647, %v643
          %v649 = vmul.f32 0.0625, %v648
          %v650 = vrcp.pop %v632
          %v651 = vmul.f32 %v632, %v650
          %v652 = vsub.f32 1.0, %v651
          %v653 = vmul.f32 %v650, %v652
          %v654 = vadd.f32 %v650, %v653
          %vm655 = vweird.f32 %v632
          %vm656 = vweird.f32 %v650
          %vm657 = vmor %vm655, %vm656
          %v658 = vsel %vm657, %v650, %v654
          %v659 = vand.u32 2147483647, %v632
          %vm660 = vcmp.eq.f32.partialorder %v659, 8.507059e+37
          %v661 = vand.u32 %v632, 2147483648
          %v662 = vor.u32 1.1754944e-38, %v661
          %v663 = vsel %vm660, %v662, %v658
          %v664 = vmul.f32 0.0625, %v663
          %v665 = vrcp.pop %v633
          %v666 = vmul.f32 %v633, %v665
          %v667 = vsub.f32 1.0, %v666
          %v668 = vmul.f32 %v665, %v667
          %v669 = vadd.f32 %v665, %v668
          %vm670 = vweird.f32 %v633
          %vm671 = vweird.f32 %v665
          %vm672 = vmor %vm670, %vm671
          %v673 = vsel %vm672, %v665, %v669
          %v674 = vand.u32 2147483647, %v633
          %vm675 = vcmp.eq.f32.partialorder %v674, 8.507059e+37
          %v676 = vand.u32 %v633, 2147483648
          %v677 = vor.u32 1.1754944e-38, %v676
          %v678 = vsel %vm675, %v677, %v673
          %v679 = vmul.f32 0.0625, %v678
          %v680 = vrcp.pop %v634
          %v681 = vmul.f32 %v634, %v680
          %v682 = vsub.f32 1.0, %v681
          %v683 = vmul.f32 %v680, %v682
          %v684 = vadd.f32 %v680, %v683
          %vm685 = vweird.f32 %v634
          %vm686 = vweird.f32 %v680
          %vm687 = vmor %vm685, %vm686
          %v688 = vsel %vm687, %v680, %v684
          %v689 = vand.u32 2147483647, %v634
          %vm690 = vcmp.eq.f32.partialorder %v689, 8.507059e+37
          %v691 = vand.u32 %v634, 2147483648
          %v692 = vor.u32 1.1754944e-38, %v691
          %v693 = vsel %vm690, %v692, %v688
          %v694 = vmul.f32 0.0625, %v693
          %696 = vset.pattern.permute.xlu0 0
          %697 = vperm.xlu0 %696, %v649
          %v698 = vpop.permute.xlu0 %697
          %701 = vset.pattern.permute.xlu0 0
          %702 = vperm.xlu0 %701, %v664
          %v703 = vpop.permute.xlu0 %702
          %706 = vset.pattern.permute.xlu0 0
          %707 = vperm.xlu0 %706, %v679
          %v708 = vpop.permute.xlu0 %707
          %711 = vset.pattern.permute.xlu0 0
          %712 = vperm.xlu0 %711, %v694
          %v713 = vpop.permute.xlu0 %712
          %v715 = vmul.f32 %v627, %v698
          %v716 = vmul.f32 %v628, %v703
          %v717 = vmul.f32 %v629, %v708
          %v718 = vmul.f32 %v630, %v713
          %v719 = vpack.c.bf16 %v715, %v715
          %v720 = vpack.c.bf16 %v716, %v716
          %v721 = vpack.c.bf16 %v717, %v717
          %v722 = vpack.c.bf16 %v718, %v718
          %vm723 = vcmask 60416
          %724 = vst.msk [vmem:[%s301] sm:$0xf] %vm723, %v719
          %725 = vst.msk [vmem:[%s301 + $0x4] sm:$0xf] %vm723, %v720
          %726 = vst.msk [vmem:[%s301 + $0x8] sm:$0xf] %vm723, %v721
          %727 = vst.msk [vmem:[%s301 + $0xc] sm:$0xf] %vm723, %v722
        $region52: #{tpu_custom_call.1} parent=31 // pred_fallthru
          _
        %s728 = sand.u32 %s136, 1
        %s729 = scalar_lea.sflag [#allocation7], %s728
        %s730 = sand.u32 %s136, 1
        %s731 = smul.addr %s730, 16
        %s732 = scalar_lea.vmem [#allocation11], %s731
        // Predicated region
        $region53: #{tpu_custom_call.1} parent=31 // pred_check
          %p733 = pneg %p146
        $region54: #{tpu_custom_call.1} parent=31 // pred_check_branch
          %735 = sbr.rel (%p733) target = $region56
        $region55: #{tpu_custom_call.1} parent=31 // pred_region
          %737 = vsyncadd %s729, 0
          %s738 = smul.addr %s28, 4
          %s739 = sadd.s32 %s29, %s738
          %s740 = smul.addr %s739, 4
          %s741 = scalar_lea.hbm %s3, %s740
          %s742 = sshll.u32 %s732, 4
          %s743 = int_to_ptr.vmem [resolvable:$true] %s742
          %s744 = sshll.u32 %s741, 4
          %s745 = int_to_ptr.hbm [resolvable:$true] %s744
          %750 = dma.vmem_to_hbm [thread:$0]  %s743, 256, %s745, %s729, 64, 64, 4
        $region56: #{tpu_custom_call.1} parent=31 // pred_fallthru
          _
      $region32: #{tpu_custom_call.1} parent=5 // pred_fallthru
        _
      %p751 = scmp.le.s32.totalorder 2, %s18
      // Predicated region
      $region57: #{tpu_custom_call.1} parent=5 // pred_check
        %p752 = pneg %p751
      $region58: #{tpu_custom_call.1} parent=5 // pred_check_branch
        %754 = sbr.rel (%p752) target = $region60
      $region59: #{tpu_custom_call.1} parent=5 // pred_region
        %s755 = ssub.s32 %s18, 2
        // Predicated region
        $region61: #{tpu_custom_call.1} parent=59 // pred_check
          %p756 = pneg %p152
        $region62: #{tpu_custom_call.1} parent=59 // pred_check_branch
          %758 = sbr.rel (%p756) target = $region64
        $region63: #{tpu_custom_call.1} parent=59 // pred_region
          %s759 = sand.u32 %s137, 1
          %s760 = scalar_lea.sflag [#allocation7], %s759
          %s761 = sand.u32 %s137, 1
          %s762 = smul.addr %s761, 16
          %s763 = scalar_lea.vmem [#allocation11], %s762
          %765 = dma.done %s760, 256
        $region64: #{tpu_custom_call.1} parent=59 // pred_fallthru
          _
      $region60: #{tpu_custom_call.1} parent=5 // pred_fallthru
        _
    $region6: #{tpu_custom_call.1} parent=1 // loop_footer
      %s22 = sadd.s32 1, %s18
    $region7: #{tpu_custom_call.1} parent=1 // loop_footer_branch
      %17 = sbr.rel target = $region3
    $region8: #{tpu_custom_call.1} parent=1 // loop_exit
      _
    %766 = vsyncpa [#allocation6], 1
    %s767 = scalar_lea.sflag [#allocation6], 1
    %768 = vsyncpa %s767, 1
    %769 = vsyncpa [#allocation9], 1
    %s770 = scalar_lea.sflag [#allocation9], 1
    %771 = vsyncpa %s770, 1
    %772 = vsyncpa [#allocation7], 1
    %s773 = scalar_lea.sflag [#allocation7], 1
    %774 = vsyncpa %s773, 1

</llo_original>
